<compile_context>
chip_gen: v5e
topology: v5e:2x2
jax: 0.10.0
libtpu: 0.0.40
codegen_flags: <defaults>
</compile_context>

<pallas_src>
import functools
import math

import jax
import jax.numpy as jnp
from jax.experimental import pallas as pl
from jax.experimental.pallas import tpu as pltpu


# ---------------- in-kernel helpers (traced into the kernel bodies) ----------------

def _layernorm(x, scale, shift, eps=1e-5):
    # matches torch: mean / biased var over last dim; rsqrt -> EUP slot
    mean = jnp.mean(x, axis=-1, keepdims=True)
    var = jnp.mean((x - mean) ** 2, axis=-1, keepdims=True)
    return scale * ((x - mean) * jax.lax.rsqrt(var + eps)) + shift


def _gelu(x):
    c = math.sqrt(2.0 / math.pi)
    return 0.5 * x * (1.0 + jnp.tanh(c * (x + 0.044715 * (x * x * x))))


# ---------------- kernel 1: LN1 + fused QKV projection ----------------

def qkv_kernel(x_ref, ln1_s_ref, ln1_b_ref, wqkv_ref, bqkv_ref,
               q_ref, k_ref, v_ref):
    x = x_ref[0]                                   # (TR, C) f32
    C = x.shape[-1]
    h = _layernorm(x, ln1_s_ref[0], ln1_b_ref[0])
    # single fused projection: (TR, C) x (C, 3C), bf16 operands, f32 accumulation
    qkv = jnp.dot(h.astype(jnp.bfloat16), wqkv_ref[...],
                  preferred_element_type=jnp.float32) + bqkv_ref[0]
    q_ref[0] = qkv[:, 0 * C:1 * C].astype(q_ref.dtype)
    k_ref[0] = qkv[:, 1 * C:2 * C].astype(k_ref.dtype)
    v_ref[0] = qkv[:, 2 * C:3 * C].astype(v_ref.dtype)


# ---------------- kernel 2: causal MHA + out-proj + residual + LN2 + MLP + residual ----------------

def attn_mlp_kernel(x_ref, q_ref, k_ref, v_ref,
                    wo_ref, bo_ref, ln2_s_ref, ln2_b_ref,
                    w1_ref, b1_ref, w2_ref, b2_ref,
                    o_ref, *, num_heads, q_tile):
    xq = x_ref[0]                                  # (TQ, C) f32 — residual stream tile
    TQ, C = xq.shape
    H = num_heads
    Dh = C // H
    T = k_ref.shape[1]

    q2 = q_ref[0]                                  # (TQ, C) bf16
    k2 = k_ref[0]                                  # (T,  C) bf16
    v2 = v_ref[0]                                  # (T,  C) bf16

    # head-major stacks (leading batch dim for the batched matmuls)
    qh = jnp.stack([q2[:, h * Dh:(h + 1) * Dh] for h in range(H)], axis=0)  # (H, TQ, Dh)
    kh = jnp.stack([k2[:, h * Dh:(h + 1) * Dh] for h in range(H)], axis=0)  # (H, T,  Dh)
    vh = jnp.stack([v2[:, h * Dh:(h + 1) * Dh] for h in range(H)], axis=0)  # (H, T,  Dh)

    # batched per-head scores: (H, TQ, T)  (NT batched matmul, f32 accumulation)
    s = jax.lax.dot_general(qh, kh, (((2,), (2,)), ((0,), (0,))),
                            preferred_element_type=jnp.float32)
    s = s * (1.0 / math.sqrt(Dh))

    # causal mask generated per query tile (no full (T,T) mask materialized in HBM)
    q_off = pl.program_id(1) * q_tile
    row = q_off + jax.lax.broadcasted_iota(jnp.int32, (TQ, T), 0)
    col = jax.lax.broadcasted_iota(jnp.int32, (TQ, T), 1)
    causal = (col <= row)[None, :, :]              # (1, TQ, T) — broadcasts over heads
    s = jnp.where(causal, s, -jnp.inf)

    # softmax over keys (EUP reciprocal for the denominator)
    m = jnp.max(s, axis=-1, keepdims=True)
    p = jnp.exp(s - m)
    denom = jnp.sum(p, axis=-1, keepdims=True)
    w = p * pl.reciprocal(denom, approx=True)

    # per-head context: (H, TQ, Dh)  (NN batched matmul)
    ctx = jax.lax.dot_general(w.astype(vh.dtype), vh, (((2,), (1,)), ((0,), (0,))),
                              preferred_element_type=jnp.float32)

    # output projection without lane-axis concat: sum_h ctx[h] @ Wo[h]
    # wo_ref is passed pre-reshaped to (H, Dh, C) on the host.
    proj = jax.lax.dot_general(ctx.astype(jnp.bfloat16), wo_ref[...],
                               (((2,), (1,)), ((0,), (0,))),
                               preferred_element_type=jnp.float32)   # (H, TQ, C)
    attn_out = jnp.sum(proj, axis=0) + bo_ref[0]

    # residual 1  (dropout p=0 -> identity)
    y = xq + attn_out

    # LN2 + feed-forward
    h2 = _layernorm(y, ln2_s_ref[0], ln2_b_ref[0])
    ff = jnp.dot(h2.astype(jnp.bfloat16), w1_ref[...],
                 preferred_element_type=jnp.float32) + b1_ref[0]
    ff = _gelu(ff)
    ff = jnp.dot(ff.astype(jnp.bfloat16), w2_ref[...],
                 preferred_element_type=jnp.float32) + b2_ref[0]

    # residual 2  (dropout p=0 -> identity)
    o_ref[0] = (y + ff).astype(o_ref.dtype)


# ---------------- VMEM sizing / compiler params ----------------

def _compiler_params(est_bytes):
    # Raise the scoped VMEM limit only when the working set outgrows the defaults
    # (16 MiB v5e / 32 MiB v6e,v7x). Toy shapes stay on the default.
    limit = None
    if est_bytes > 12 * 1024 * 1024:
        limit = int(min(2 * est_bytes, 96 * 1024 * 1024))
    return pltpu.CompilerParams(
        dimension_semantics=("parallel", "parallel"),
        vmem_limit_bytes=limit)


def _est_vmem_k1(q_tile, C):
    f32, bf16 = 4, 2
    acts = q_tile * C * f32 + q_tile * 3 * C * f32 + 3 * q_tile * C * bf16
    wts = C * 3 * C * bf16 + 3 * C * f32 + 2 * C * f32
    return 2 * (acts + wts)          # ~double buffering


def _est_vmem_k2(q_tile, T, C, H):
    f32, bf16 = 4, 2
    F = 4 * C
    acts = (q_tile * C * f32 + 3 * T * C * bf16
            + 3 * H * q_tile * T * f32          # scores / probs
            + H * q_tile * C * f32              # per-head out-proj
            + 2 * q_tile * F * f32)             # MLP intermediate
    wts = (C * C + 2 * C * F) * bf16 + (3 * C + F) * f32
    return 2 * (acts + wts)


# ---------------- wrapper ----------------

def transformer_block(x, params, num_heads):
    """x: (B, T, C) float32. params: dict of weights (see init_params)."""
    B, T, C = x.shape
    F = 4 * C
    assert C % num_heads == 0
    Dh = C // num_heads

    q_tile = T if T <= 128 else 128
    assert T % q_tile == 0, "sequence length must be a multiple of the query tile"

    bf16 = jnp.bfloat16
    # host-side fused QKV weight/bias and bf16 weight casts (halve weight DMA, MXU-native)
    wqkv = jnp.concatenate([params['wq'], params['wk'], params['wv']], axis=1).astype(bf16)  # (C, 3C)
    bqkv = jnp.concatenate([params['bq'], params['bk'], params['bv']]).reshape(1, 3 * C)
    wo3 = params['wo'].reshape(num_heads, Dh, C).astype(bf16)                                # (H, Dh, C)
    w1 = params['w1'].astype(bf16)
    w2 = params['w2'].astype(bf16)

    def const_spec(shape):
        # constant (grid-invariant) block: index map must return len(shape) block indices
        zeros = (0,) * len(shape)
        return pl.BlockSpec(shape, lambda b, t: zeros)

    # ---- kernel 1: LN1 + fused QKV projection ----
    q, k, v = pl.pallas_call(
        qkv_kernel,
        out_shape=tuple(jax.ShapeDtypeStruct((B, T, C), bf16) for _ in range(3)),
        grid=(B, T // q_tile),
        in_specs=[
            pl.BlockSpec((1, q_tile, C), lambda b, t: (b, t, 0)),    # x
            const_spec((1, C)), const_spec((1, C)),                  # ln1 scale / shift
            const_spec((C, 3 * C)), const_spec((1, 3 * C)),          # Wqkv, bqkv
        ],
        out_specs=tuple(pl.BlockSpec((1, q_tile, C), lambda b, t: (b, t, 0))
                        for _ in range(3)),
        compiler_params=_compiler_params(_est_vmem_k1(q_tile, C)),
    )(x,
      params['ln1_s'].reshape(1, C), params['ln1_b'].reshape(1, C),
      wqkv, bqkv)

    # ---- kernel 2: attention + out-proj + residual + LN2 + MLP + residual ----
    kern2 = functools.partial(attn_mlp_kernel, num_heads=num_heads, q_tile=q_tile)
    out = pl.pallas_call(
        kern2,
        out_shape=jax.ShapeDtypeStruct((B, T, C), x.dtype),
        grid=(B, T // q_tile),
        in_specs=[
            pl.BlockSpec((1, q_tile, C), lambda b, qi: (b, qi, 0)),  # x (residual)
            pl.BlockSpec((1, q_tile, C), lambda b, qi: (b, qi, 0)),  # q tile
            pl.BlockSpec((1, T, C), lambda b, qi: (b, 0, 0)),        # k (full seq)
            pl.BlockSpec((1, T, C), lambda b, qi: (b, 0, 0)),        # v (full seq)
            const_spec((num_heads, Dh, C)), const_spec((1, C)),      # Wo (head-major), bo
            const_spec((1, C)), const_spec((1, C)),                  # ln2 scale / shift
            const_spec((C, F)), const_spec((1, F)),                  # W1, b1
            const_spec((F, C)), const_spec((1, C)),                  # W2, b2
        ],
        out_specs=pl.BlockSpec((1, q_tile, C), lambda b, qi: (b, qi, 0)),
        compiler_params=_compiler_params(_est_vmem_k2(q_tile, T, C, num_heads)),
    )(x, q, k, v,
      wo3, params['bo'].reshape(1, C),
      params['ln2_s'].reshape(1, C), params['ln2_b'].reshape(1, C),
      w1, params['b1'].reshape(1, F),
      w2, params['b2'].reshape(1, C))
    return out


# ---------------- pure-JAX reference (for correctness check) ----------------

def reference(x, params, num_heads):
    B, T, C = x.shape
    H, Dh = num_heads, C // num_heads

    def ln(v, s, b):
        m = v.mean(-1, keepdims=True)
        var = ((v - m) ** 2).mean(-1, keepdims=True)
        return s * (v - m) / jnp.sqrt(var + 1e-5) + b

    sc = x
    h = ln(x, params['ln1_s'], params['ln1_b'])
    q = h @ params['wq'] + params['bq']
    k = h @ params['wk'] + params['bk']
    v = h @ params['wv'] + params['bv']
    q = q.reshape(B, T, H, Dh).transpose(0, 2, 1, 3)
    k = k.reshape(B, T, H, Dh).transpose(0, 2, 1, 3)
    v = v.reshape(B, T, H, Dh).transpose(0, 2, 1, 3)
    s = jnp.einsum('bhtd,bhsd->bhts', q, k) / jnp.sqrt(jnp.float32(Dh))
    mask = jnp.tril(jnp.ones((T, T), bool))
    s = jnp.where(mask, s, -jnp.inf)
    w = jax.nn.softmax(s, axis=-1)
    ctx = jnp.einsum('bhts,bhsd->bhtd', w, v).transpose(0, 2, 1, 3).reshape(B, T, C)
    x = sc + (ctx @ params['wo'] + params['bo'])

    sc = x
    h = ln(x, params['ln2_s'], params['ln2_b'])
    ff = h @ params['w1'] + params['b1']
    ff = 0.5 * ff * (1 + jnp.tanh(jnp.sqrt(2.0 / jnp.pi) * (ff + 0.044715 * ff ** 3)))
    ff = ff @ params['w2'] + params['b2']
    return sc + ff


# ---------------- param init ----------------

def init_params(key, n_embd):
    C, F = n_embd, 4 * n_embd
    ks = jax.random.split(key, 8)
    s = 0.02
    return {
        'ln1_s': jnp.ones((C,), jnp.float32),
        'ln1_b': jnp.zeros((C,), jnp.float32),
        'wq': s * jax.random.normal(ks[0], (C, C), jnp.float32),
        'bq': jnp.zeros((C,), jnp.float32),
        'wk': s * jax.random.normal(ks[1], (C, C), jnp.float32),
        'bk': jnp.zeros((C,), jnp.float32),
        'wv': s * jax.random.normal(ks[2], (C, C), jnp.float32),
        'bv': jnp.zeros((C,), jnp.float32),
        'wo': s * jax.random.normal(ks[3], (C, C), jnp.float32),
        'bo': jnp.zeros((C,), jnp.float32),
        'ln2_s': jnp.ones((C,), jnp.float32),
        'ln2_b': jnp.zeros((C,), jnp.float32),
        'w1': s * jax.random.normal(ks[4], (C, F), jnp.float32),
        'b1': 0.01 * jax.random.normal(ks[5], (F,), jnp.float32),
        'w2': s * jax.random.normal(ks[6], (F, C), jnp.float32),
        'b2': 0.01 * jax.random.normal(ks[7], (C,), jnp.float32),
    }


if __name__ == "__main__":
    # small cfg consistent with the module
    B, T, C, H = 2, 8, 32, 4          # batch, context_length, n_embd, n_heads
    key = jax.random.PRNGKey(0)
    kx, kp = jax.random.split(key)
    x = jax.random.normal(kx, (B, T, C), jnp.float32)
    params = init_params(kp, C)

    out = transformer_block(x, params, num_heads=H)
    out = jax.block_until_ready(out)

    ref = reference(x, params, H)
    assert out.shape == (B, T, C)
    # bf16 matmul operands in the kernel vs f32 reference -> relaxed tolerance
    assert jnp.allclose(out, ref, rtol=2e-2, atol=2e-2), \
        f"max err {jnp.max(jnp.abs(out - ref))}"

    print("KERNEL_OK")
</pallas_src>

<mosaic_0001>
module attributes {stable_mosaic.version = 11 : i64} {
  func.func @qkv_kernel(%arg0: i32, %arg1: i32, %arg2: memref<1x8x32xf32, #tpu.memory_space<vmem>>, %arg3: memref<1x32xf32, #tpu.memory_space<vmem>>, %arg4: memref<1x32xf32, #tpu.memory_space<vmem>>, %arg5: memref<32x96xbf16, #tpu.memory_space<vmem>>, %arg6: memref<1x96xf32, #tpu.memory_space<vmem>>, %arg7: memref<1x8x32xbf16, #tpu.memory_space<vmem>>, %arg8: memref<1x8x32xbf16, #tpu.memory_space<vmem>>, %arg9: memref<1x8x32xbf16, #tpu.memory_space<vmem>>) attributes {dimension_semantics = [#tpu.dimension_semantics<parallel>, #tpu.dimension_semantics<parallel>], iteration_bounds = array<i64: 2, 1>, scalar_prefetch = 0 : i64, scratch_operands = 0 : i64, tpu.core_type = #tpu.core_type<tc>, window_params = [{transform_indices = @transform_0, window_bounds = array<i64: 1, 8, 32>}, {pipeline_mode = #tpu.pipeline_mode<synchronous>, transform_indices = @transform_1, window_bounds = array<i64: 1, 32>}, {pipeline_mode = #tpu.pipeline_mode<synchronous>, transform_indices = @transform_2, window_bounds = array<i64: 1, 32>}, {pipeline_mode = #tpu.pipeline_mode<synchronous>, transform_indices = @transform_3, window_bounds = array<i64: 32, 96>}, {pipeline_mode = #tpu.pipeline_mode<synchronous>, transform_indices = @transform_4, window_bounds = array<i64: 1, 96>}, {transform_indices = @transform_5, window_bounds = array<i64: 1, 8, 32>}, {transform_indices = @transform_6, window_bounds = array<i64: 1, 8, 32>}, {transform_indices = @transform_7, window_bounds = array<i64: 1, 8, 32>}]} {
    %c0 = arith.constant 0 : index
    %c0_0 = arith.constant 0 : index
    %c0_1 = arith.constant 0 : index
    %0 = vector.load %arg2[%c0, %c0_0, %c0_1] : memref<1x8x32xf32, #tpu.memory_space<vmem>>, vector<1x8x32xf32>
    %1 = vector.shape_cast %0 : vector<1x8x32xf32> to vector<8x32xf32>
    %c0_2 = arith.constant 0 : index
    %c0_3 = arith.constant 0 : index
    %2 = vector.load %arg3[%c0_2, %c0_3] : memref<1x32xf32, #tpu.memory_space<vmem>>, vector<1x32xf32>
    %3 = vector.shape_cast %2 : vector<1x32xf32> to vector<32xf32>
    %c0_4 = arith.constant 0 : index
    %c0_5 = arith.constant 0 : index
    %4 = vector.load %arg4[%c0_4, %c0_5] : memref<1x32xf32, #tpu.memory_space<vmem>>, vector<1x32xf32>
    %5 = vector.shape_cast %4 : vector<1x32xf32> to vector<32xf32>
    %cst = arith.constant dense<0.000000e+00> : vector<8xf32>
    %6 = vector.multi_reduction <add>, %1, %cst [1] : vector<8x32xf32> to vector<8xf32>
    %7 = vector.shape_cast %6 : vector<8xf32> to vector<8x1xf32>
    %cst_6 = arith.constant 3.200000e+01 : f32
    %8 = vector.broadcast %cst_6 : f32 to vector<8x1xf32>
    %9 = arith.divf %7, %8 : vector<8x1xf32>
    %10 = vector.broadcast %9 : vector<8x1xf32> to vector<8x32xf32>
    %11 = arith.subf %1, %10 : vector<8x32xf32>
    %12 = arith.mulf %11, %11 : vector<8x32xf32>
    %cst_7 = arith.constant dense<0.000000e+00> : vector<8xf32>
    %13 = vector.multi_reduction <add>, %12, %cst_7 [1] : vector<8x32xf32> to vector<8xf32>
    %14 = vector.shape_cast %13 : vector<8xf32> to vector<8x1xf32>
    %cst_8 = arith.constant 3.200000e+01 : f32
    %15 = vector.broadcast %cst_8 : f32 to vector<8x1xf32>
    %16 = arith.divf %14, %15 : vector<8x1xf32>
    %17 = vector.broadcast %9 : vector<8x1xf32> to vector<8x32xf32>
    %18 = arith.subf %1, %17 : vector<8x32xf32>
    %cst_9 = arith.constant 9.99999974E-6 : f32
    %19 = vector.broadcast %cst_9 : f32 to vector<8x1xf32>
    %20 = arith.addf %16, %19 : vector<8x1xf32>
    %21 = math.rsqrt %20 : vector<8x1xf32>
    %22 = vector.broadcast %21 : vector<8x1xf32> to vector<8x32xf32>
    %23 = arith.mulf %18, %22 : vector<8x32xf32>
    %24 = vector.shape_cast %3 : vector<32xf32> to vector<1x32xf32>
    %25 = vector.broadcast %24 : vector<1x32xf32> to vector<8x32xf32>
    %26 = arith.mulf %25, %23 : vector<8x32xf32>
    %27 = vector.shape_cast %5 : vector<32xf32> to vector<1x32xf32>
    %28 = vector.broadcast %27 : vector<1x32xf32> to vector<8x32xf32>
    %29 = arith.addf %26, %28 : vector<8x32xf32>
    %30 = arith.truncf %29 : vector<8x32xf32> to vector<8x32xbf16>
    %c0_10 = arith.constant 0 : index
    %c0_11 = arith.constant 0 : index
    %31 = vector.load %arg5[%c0_10, %c0_11] : memref<32x96xbf16, #tpu.memory_space<vmem>>, vector<32x96xbf16>
    %cst_12 = arith.constant dense<0.000000e+00> : vector<8x96xf32>
    %32 = tpu.matmul %30, %31, %cst_12 {dimension_numbers = #tpu.dot_dimension_numbers<[1], [0], [0], [1], [0, 0, 1, 1], [], []>} : vector<8x32xbf16>, vector<32x96xbf16>, vector<8x96xf32> -> vector<8x96xf32>
    %c0_13 = arith.constant 0 : index
    %c0_14 = arith.constant 0 : index
    %33 = vector.load %arg6[%c0_13, %c0_14] : memref<1x96xf32, #tpu.memory_space<vmem>>, vector<1x96xf32>
    %34 = vector.shape_cast %33 : vector<1x96xf32> to vector<96xf32>
    %35 = vector.shape_cast %34 : vector<96xf32> to vector<1x96xf32>
    %36 = vector.broadcast %35 : vector<1x96xf32> to vector<8x96xf32>
    %37 = arith.addf %32, %36 : vector<8x96xf32>
    %38 = vector.extract_strided_slice %37 {offsets = [0, 0], sizes = [8, 32], strides = [1, 1]} : vector<8x96xf32> to vector<8x32xf32>
    %39 = arith.truncf %38 : vector<8x32xf32> to vector<8x32xbf16>
    %c0_15 = arith.constant 0 : index
    %c0_16 = arith.constant 0 : index
    %c0_17 = arith.constant 0 : index
    %40 = vector.load %arg7[%c0_15, %c0_16, %c0_17] : memref<1x8x32xbf16, #tpu.memory_space<vmem>>, vector<1x8x32xbf16>
    %41 = vector.shape_cast %40 : vector<1x8x32xbf16> to vector<8x32xbf16>
    %42 = vector.shape_cast %39 : vector<8x32xbf16> to vector<1x8x32xbf16>
    tpu.vector_store %arg7[%c0_15, %c0_16, %c0_17], %42 {strides = array<i32>} : memref<1x8x32xbf16, #tpu.memory_space<vmem>>, vector<1x8x32xbf16>,
    %43 = vector.extract_strided_slice %37 {offsets = [0, 32], sizes = [8, 32], strides = [1, 1]} : vector<8x96xf32> to vector<8x32xf32>
    %44 = arith.truncf %43 : vector<8x32xf32> to vector<8x32xbf16>
    %c0_18 = arith.constant 0 : index
    %c0_19 = arith.constant 0 : index
    %c0_20 = arith.constant 0 : index
    %45 = vector.load %arg8[%c0_18, %c0_19, %c0_20] : memref<1x8x32xbf16, #tpu.memory_space<vmem>>, vector<1x8x32xbf16>
    %46 = vector.shape_cast %45 : vector<1x8x32xbf16> to vector<8x32xbf16>
    %47 = vector.shape_cast %44 : vector<8x32xbf16> to vector<1x8x32xbf16>
    tpu.vector_store %arg8[%c0_18, %c0_19, %c0_20], %47 {strides = array<i32>} : memref<1x8x32xbf16, #tpu.memory_space<vmem>>, vector<1x8x32xbf16>,
    %48 = vector.extract_strided_slice %37 {offsets = [0, 64], sizes = [8, 32], strides = [1, 1]} : vector<8x96xf32> to vector<8x32xf32>
    %49 = arith.truncf %48 : vector<8x32xf32> to vector<8x32xbf16>
    %c0_21 = arith.constant 0 : index
    %c0_22 = arith.constant 0 : index
    %c0_23 = arith.constant 0 : index
    %50 = vector.load %arg9[%c0_21, %c0_22, %c0_23] : memref<1x8x32xbf16, #tpu.memory_space<vmem>>, vector<1x8x32xbf16>
    %51 = vector.shape_cast %50 : vector<1x8x32xbf16> to vector<8x32xbf16>
    %52 = vector.shape_cast %49 : vector<8x32xbf16> to vector<1x8x32xbf16>
    tpu.vector_store %arg9[%c0_21, %c0_22, %c0_23], %52 {strides = array<i32>} : memref<1x8x32xbf16, #tpu.memory_space<vmem>>, vector<1x8x32xbf16>,
    return
  }
  func.func @transform_0(%arg0: i32, %arg1: i32) -> (i32, i32, i32) {
    %c0_i32 = arith.constant 0 : i32
    %c0_i32_0 = arith.constant 0 : i32
    return %arg0, %arg1, %c0_i32 : i32, i32, i32
  }
  func.func @transform_1(%arg0: i32, %arg1: i32) -> (i32, i32) {
    %c0_i32 = arith.constant 0 : i32
    %c0_i32_0 = arith.constant 0 : i32
    %c0_i32_1 = arith.constant 0 : i32
    return %c0_i32, %c0_i32_0 : i32, i32
  }
  func.func @transform_2(%arg0: i32, %arg1: i32) -> (i32, i32) {
    %c0_i32 = arith.constant 0 : i32
    %c0_i32_0 = arith.constant 0 : i32
    %c0_i32_1 = arith.constant 0 : i32
    return %c0_i32, %c0_i32_0 : i32, i32
  }
  func.func @transform_3(%arg0: i32, %arg1: i32) -> (i32, i32) {
    %c0_i32 = arith.constant 0 : i32
    %c0_i32_0 = arith.constant 0 : i32
    %c0_i32_1 = arith.constant 0 : i32
    return %c0_i32, %c0_i32_0 : i32, i32
  }
  func.func @transform_4(%arg0: i32, %arg1: i32) -> (i32, i32) {
    %c0_i32 = arith.constant 0 : i32
    %c0_i32_0 = arith.constant 0 : i32
    %c0_i32_1 = arith.constant 0 : i32
    return %c0_i32, %c0_i32_0 : i32, i32
  }
  func.func @transform_5(%arg0: i32, %arg1: i32) -> (i32, i32, i32) {
    %c0_i32 = arith.constant 0 : i32
    %c0_i32_0 = arith.constant 0 : i32
    return %arg0, %arg1, %c0_i32 : i32, i32, i32
  }
  func.func @transform_6(%arg0: i32, %arg1: i32) -> (i32, i32, i32) {
    %c0_i32 = arith.constant 0 : i32
    %c0_i32_0 = arith.constant 0 : i32
    return %arg0, %arg1, %c0_i32 : i32, i32, i32
  }
  func.func @transform_7(%arg0: i32, %arg1: i32) -> (i32, i32, i32) {
    %c0_i32 = arith.constant 0 : i32
    %c0_i32_0 = arith.constant 0 : i32
    return %arg0, %arg1, %c0_i32 : i32, i32, i32
  }
}

</mosaic_0001>

<llo_original>
// kernel: tpu_custom_call.1
$region0: #{tpu_custom_call.1}
  #allocation0 [shape = 'u32[]', space=smem, size = 0x4, offset = 0x4, fixed_abs, tag = 'smem constant byte address 0x4 - core index']
  #allocation1 [shape = 'u32[72,128]{1,0:T(1,128)}', space=vmem, size = 0x9000, scoped, tag = 'internal scratch']
  %s0 = inlined_call_operand.hbm [shape: f32[2,8,32], index: 0, kind: input, shape index: {}]
  %s1 = inlined_call_operand.hbm [shape: f32[1,32], index: 1, kind: input, shape index: {}]
  %s2 = inlined_call_operand.vmem [shape: f32[1,32], index: 2, kind: input, shape index: {}]
  %s3 = inlined_call_operand.hbm [shape: bf16[32,96], index: 3, kind: input, shape index: {}]
  %s4 = inlined_call_operand.vmem [shape: f32[1,96], index: 4, kind: input, shape index: {}]
  %s5 = inlined_call_operand.hbm [shape: bf16[2,8,32], index: 5, kind: output, shape index: {0}]
  %s6 = inlined_call_operand.hbm [shape: bf16[2,8,32], index: 6, kind: output, shape index: {1}]
  %s7 = inlined_call_operand.hbm [shape: bf16[2,8,32], index: 7, kind: output, shape index: {2}]
  %8 = xla_tuple %s5, %s6, %s7
  %s9 = sld [smem:[#allocation0]]
  $region81: #{tpu_custom_call.1} parent=0
    _
  %s11 = ssub.s32 1, %s9
  %s12 = scalar_select 0, %s11, %s9
  $region1: #{tpu_custom_call.1} parent=0
    #allocation2 [shape = 'u8[8192]{0}', space=vmem, size = 0x2000, scoped, tag = 'input window, operand 0']
    #allocation3 [shape = 's32[2]{0}', space=sflag, size = 0x8, scoped, tag = 'scoped memory for tpu_custom_call.1']
    #allocation4 [shape = 's32[2]{0}', space=sflag, size = 0x8, scoped, tag = 'scoped memory for tpu_custom_call.1']
    #allocation5 [shape = 'u8[512]{0}', space=vmem, size = 0x400, scoped, tag = 'input window, operand 1, single buffered']
    #allocation6 [shape = 's32[1]{0}', space=sflag, size = 0x4, scoped, tag = 'scoped memory for tpu_custom_call.1']
    #allocation7 [shape = 'u8[8192]{0}', space=vmem, size = 0x2000, scoped, tag = 'input window, operand 3, single buffered']
    #allocation8 [shape = 'u8[4096]{0}', space=vmem, size = 0x1000, scoped, tag = 'output window, operand 0']
    #allocation9 [shape = 'u8[4096]{0}', space=vmem, size = 0x1000, scoped, tag = 'output window, operand 1']
    #allocation10 [shape = 's32[2]{0}', space=sflag, size = 0x8, scoped, tag = 'scoped memory for tpu_custom_call.1']
    #allocation11 [shape = 'u8[4096]{0}', space=vmem, size = 0x1000, scoped, tag = 'output window, operand 2']
    %13 = vsyncpa [#allocation3], 0
    %s14 = scalar_lea.sflag [#allocation3], 1
    %15 = vsyncpa %s14, 0
    %16 = vsyncpa [#allocation6], 0
    %17 = vsyncpa [#allocation4], 0
    %s18 = scalar_lea.sflag [#allocation4], 1
    %19 = vsyncpa %s18, 0
    %20 = vsyncpa [#allocation10], 0
    %s21 = scalar_lea.sflag [#allocation10], 1
    %22 = vsyncpa %s21, 0
    loop: start=0, step=1, limit=4
    $region2: #{tpu_custom_call.1} parent=1 // loop_pre_header
      _
    $region3: #{tpu_custom_call.1} parent=1 // loop_header
      %s24 = sphi 0, %s28
      %p25 = scmp.ge.s32.totalorder %s24, 4
      %s31 = sphi 0, %s43
      %s32 = sphi 0, %s39
      %s33 = sphi 0, %s31
      %s34 = sphi 0, %s32
      %s35 = sphi 0, %s33
      %s36 = sphi 0, %s34
      %s48 = sphi 0, %s50
      %s51 = sphi 0, %s48
      %s52 = sphi 0, %s51
      %s68 = sphi 0, %s52
      %s72 = sphi 0, %s72
      %s74 = sphi 0, %s72
      %s75 = sphi 0, %s74
      %s89 = sphi 0, %s75
      %s93 = sphi 0, %s93
      %s95 = sphi 0, %s93
      %s96 = sphi 0, %s95
      %s110 = sphi 0, %s96
      %s114 = sphi 0, %s114
      %s116 = sphi 0, %s114
      %s117 = sphi 0, %s116
      %s131 = sphi 0, %s117
      %s135 = sphi 0, %s135
      %s137 = sphi 0, %s135
      %s138 = sphi 0, %s137
      %s152 = sphi 0, %s138
      %s160 = sphi 0, %s162
      %s163 = sphi 0, %s160
      %s164 = sphi 0, %s163
      %s180 = sphi 0, %s164
      %s188 = sphi 0, %s190
      %s191 = sphi 0, %s188
      %s192 = sphi 0, %s191
      %s208 = sphi 0, %s192
      %s216 = sphi 0, %s218
      %s219 = sphi 0, %s216
      %s220 = sphi 0, %s219
      %s236 = sphi 0, %s220
    $region4: #{tpu_custom_call.1} parent=1 // loop_header_branch
      %27 = sbr.rel (%p25) target = $region8
    $region5: #{tpu_custom_call.1} parent=1 // loop_body
      %s29 = ssub.s32 %s24, 1
      %s30 = ssub.s32 %s24, 2
      %s37 = sadd.s32 1, %s32
      %p38 = scmp.ge.s32.totalorder %s37, 1
      %s39 = scalar_select %p38, 0, %s37
      %s40 = sadd.s32 1, %s31
      %s41 = scalar_select %p38, %s40, %s31
      %p42 = scmp.ge.s32.totalorder %s41, 2
      %s43 = scalar_select %p42, 0, %s41
      %s44 = ssub.s32 %s31, %s43
      %s45 = ssub.s32 %s32, %s39
      %s46 = sor.u32 %s44, %s45
      %p47 = scmp.eq.s32.totalorder %s46, 0
      %s49 = sadd.s32 %s48, 1
      %s50 = scalar_select %p47, %s48, %s49
      %p53 = pneg %p47
      %p54 = scmp.eq.s32.totalorder %s24, 1
      %p55 = por %p53, %p54
      %p56 = scmp.ne.s32.totalorder %s48, %s51
      %p57 = scmp.eq.s32.totalorder %s24, 0
      %p58 = por %p56, %p57
      %p59 = scmp.ne.s32.totalorder %s48, %s51
      %p60 = scmp.eq.s32.totalorder %s29, 1
      %p61 = por %p59, %p60
      %p62 = scmp.ne.s32.totalorder %s51, %s52
      %p63 = scmp.eq.s32.totalorder %s29, 0
      %p64 = por %p62, %p63
      %p65 = scmp.ne.s32.totalorder %s51, %s52
      %p66 = scmp.eq.s32.totalorder %s30, 1
      %p67 = por %p65, %p66
      %p69 = scmp.ne.s32.totalorder %s52, %s68
      %p70 = scmp.eq.s32.totalorder %s30, 0
      %p71 = por %p69, %p70
      %s73 = sadd.s32 %s72, 1
      %p76 = scmp.eq.s32.totalorder %s24, 1
      %p77 = scmp.ne.s32.totalorder %s72, %s74
      %p78 = scmp.eq.s32.totalorder %s24, 0
      %p79 = por %p77, %p78
      %p80 = scmp.ne.s32.totalorder %s72, %s74
      %p81 = scmp.eq.s32.totalorder %s29, 1
      %p82 = por %p80, %p81
      %p83 = scmp.ne.s32.totalorder %s74, %s75
      %p84 = scmp.eq.s32.totalorder %s29, 0
      %p85 = por %p83, %p84
      %p86 = scmp.ne.s32.totalorder %s74, %s75
      %p87 = scmp.eq.s32.totalorder %s30, 1
      %p88 = por %p86, %p87
      %p90 = scmp.ne.s32.totalorder %s75, %s89
      %p91 = scmp.eq.s32.totalorder %s30, 0
      %p92 = por %p90, %p91
      %s94 = sadd.s32 %s93, 1
      %p97 = scmp.eq.s32.totalorder %s24, 1
      %p98 = scmp.ne.s32.totalorder %s93, %s95
      %p99 = scmp.eq.s32.totalorder %s24, 0
      %p100 = por %p98, %p99
      %p101 = scmp.ne.s32.totalorder %s93, %s95
      %p102 = scmp.eq.s32.totalorder %s29, 1
      %p103 = por %p101, %p102
      %p104 = scmp.ne.s32.totalorder %s95, %s96
      %p105 = scmp.eq.s32.totalorder %s29, 0
      %p106 = por %p104, %p105
      %p107 = scmp.ne.s32.totalorder %s95, %s96
      %p108 = scmp.eq.s32.totalorder %s30, 1
      %p109 = por %p107, %p108
      %p111 = scmp.ne.s32.totalorder %s96, %s110
      %p112 = scmp.eq.s32.totalorder %s30, 0
      %p113 = por %p111, %p112
      %s115 = sadd.s32 %s114, 1
      %p118 = scmp.eq.s32.totalorder %s24, 1
      %p119 = scmp.ne.s32.totalorder %s114, %s116
      %p120 = scmp.eq.s32.totalorder %s24, 0
      %p121 = por %p119, %p120
      %p122 = scmp.ne.s32.totalorder %s114, %s116
      %p123 = scmp.eq.s32.totalorder %s29, 1
      %p124 = por %p122, %p123
      %p125 = scmp.ne.s32.totalorder %s116, %s117
      %p126 = scmp.eq.s32.totalorder %s29, 0
      %p127 = por %p125, %p126
      %p128 = scmp.ne.s32.totalorder %s116, %s117
      %p129 = scmp.eq.s32.totalorder %s30, 1
      %p130 = por %p128, %p129
      %p132 = scmp.ne.s32.totalorder %s117, %s131
      %p133 = scmp.eq.s32.totalorder %s30, 0
      %p134 = por %p132, %p133
      %s136 = sadd.s32 %s135, 1
      %p139 = scmp.eq.s32.totalorder %s24, 1
      %p140 = scmp.ne.s32.totalorder %s135, %s137
      %p141 = scmp.eq.s32.totalorder %s24, 0
      %p142 = por %p140, %p141
      %p143 = scmp.ne.s32.totalorder %s135, %s137
      %p144 = scmp.eq.s32.totalorder %s29, 1
      %p145 = por %p143, %p144
      %p146 = scmp.ne.s32.totalorder %s137, %s138
      %p147 = scmp.eq.s32.totalorder %s29, 0
      %p148 = por %p146, %p147
      %p149 = scmp.ne.s32.totalorder %s137, %s138
      %p150 = scmp.eq.s32.totalorder %s30, 1
      %p151 = por %p149, %p150
      %p153 = scmp.ne.s32.totalorder %s138, %s152
      %p154 = scmp.eq.s32.totalorder %s30, 0
      %p155 = por %p153, %p154
      %s156 = ssub.s32 %s31, %s43
      %s157 = ssub.s32 %s32, %s39
      %s158 = sor.u32 %s156, %s157
      %p159 = scmp.eq.s32.totalorder %s158, 0
      %s161 = sadd.s32 %s160, 1
      %s162 = scalar_select %p159, %s160, %s161
      %p165 = pneg %p159
      %p166 = scmp.eq.s32.totalorder %s24, 1
      %p167 = por %p165, %p166
      %p168 = scmp.ne.s32.totalorder %s160, %s163
      %p169 = scmp.eq.s32.totalorder %s24, 0
      %p170 = por %p168, %p169
      %p171 = scmp.ne.s32.totalorder %s160, %s163
      %p172 = scmp.eq.s32.totalorder %s29, 1
      %p173 = por %p171, %p172
      %p174 = scmp.ne.s32.totalorder %s163, %s164
      %p175 = scmp.eq.s32.totalorder %s29, 0
      %p176 = por %p174, %p175
      %p177 = scmp.ne.s32.totalorder %s163, %s164
      %p178 = scmp.eq.s32.totalorder %s30, 1
      %p179 = por %p177, %p178
      %p181 = scmp.ne.s32.totalorder %s164, %s180
      %p182 = scmp.eq.s32.totalorder %s30, 0
      %p183 = por %p181, %p182
      %s184 = ssub.s32 %s31, %s43
      %s185 = ssub.s32 %s32, %s39
      %s186 = sor.u32 %s184, %s185
      %p187 = scmp.eq.s32.totalorder %s186, 0
      %s189 = sadd.s32 %s188, 1
      %s190 = scalar_select %p187, %s188, %s189
      %p193 = pneg %p187
      %p194 = scmp.eq.s32.totalorder %s24, 1
      %p195 = por %p193, %p194
      %p196 = scmp.ne.s32.totalorder %s188, %s191
      %p197 = scmp.eq.s32.totalorder %s24, 0
      %p198 = por %p196, %p197
      %p199 = scmp.ne.s32.totalorder %s188, %s191
      %p200 = scmp.eq.s32.totalorder %s29, 1
      %p201 = por %p199, %p200
      %p202 = scmp.ne.s32.totalorder %s191, %s192
      %p203 = scmp.eq.s32.totalorder %s29, 0
      %p204 = por %p202, %p203
      %p205 = scmp.ne.s32.totalorder %s191, %s192
      %p206 = scmp.eq.s32.totalorder %s30, 1
      %p207 = por %p205, %p206
      %p209 = scmp.ne.s32.totalorder %s192, %s208
      %p210 = scmp.eq.s32.totalorder %s30, 0
      %p211 = por %p209, %p210
      %s212 = ssub.s32 %s31, %s43
      %s213 = ssub.s32 %s32, %s39
      %s214 = sor.u32 %s212, %s213
      %p215 = scmp.eq.s32.totalorder %s214, 0
      %s217 = sadd.s32 %s216, 1
      %s218 = scalar_select %p215, %s216, %s217
      %p221 = pneg %p215
      %p222 = scmp.eq.s32.totalorder %s24, 1
      %p223 = por %p221, %p222
      %p224 = scmp.ne.s32.totalorder %s216, %s219
      %p225 = scmp.eq.s32.totalorder %s24, 0
      %p226 = por %p224, %p225
      %p227 = scmp.ne.s32.totalorder %s216, %s219
      %p228 = scmp.eq.s32.totalorder %s29, 1
      %p229 = por %p227, %p228
      %p230 = scmp.ne.s32.totalorder %s219, %s220
      %p231 = scmp.eq.s32.totalorder %s29, 0
      %p232 = por %p230, %p231
      %p233 = scmp.ne.s32.totalorder %s219, %s220
      %p234 = scmp.eq.s32.totalorder %s30, 1
      %p235 = por %p233, %p234
      %p237 = scmp.ne.s32.totalorder %s220, %s236
      %p238 = scmp.eq.s32.totalorder %s30, 0
      %p239 = por %p237, %p238
      %p240 = scmp.le.s32.totalorder 1, %s24
      %p241 = scmp.lt.s32.totalorder %s24, 3
      %p242 = pnand %p240, %p241
      %p243 = pneg %p242
      // Predicated region
      $region9: #{tpu_custom_call.1} parent=5 // pred_check
        _
      $region10: #{tpu_custom_call.1} parent=5 // pred_check_branch
        %245 = sbr.rel (%p242) target = $region12
      $region11: #{tpu_custom_call.1} parent=5 // pred_region
        %s246 = ssub.s32 %s24, 1
        // Predicated region
        $region13: #{tpu_custom_call.1} parent=11 // pred_check
          %p247 = pneg %p85
        $region14: #{tpu_custom_call.1} parent=11 // pred_check_branch
          %249 = sbr.rel (%p247) target = $region16
        $region15: #{tpu_custom_call.1} parent=11 // pred_region
          %251 = vsyncadd [#allocation6], 0
          %s253 = sshll.u32 %s1, 4
          %s254 = int_to_ptr.hbm [resolvable:$true] %s253
          %s255 = sshll.u32 [#allocation5], 4
          %s256 = int_to_ptr.vmem [resolvable:$true] %s255
          %258 = dma.hbm_to_vmem [thread:$0]  %s254, 16, %s256, [#allocation6]
        $region16: #{tpu_custom_call.1} parent=11 // pred_fallthru
          _
        // Predicated region
        $region17: #{tpu_custom_call.1} parent=11 // pred_check
          %p259 = pneg %p106
        $region18: #{tpu_custom_call.1} parent=11 // pred_check_branch
          %261 = sbr.rel (%p259) target = $region20
        $region19: #{tpu_custom_call.1} parent=11 // pred_region
          _
        $region20: #{tpu_custom_call.1} parent=11 // pred_fallthru
          _
        // Predicated region
        $region21: #{tpu_custom_call.1} parent=11 // pred_check
          %p262 = pneg %p127
        $region22: #{tpu_custom_call.1} parent=11 // pred_check_branch
          %264 = sbr.rel (%p262) target = $region24
        $region23: #{tpu_custom_call.1} parent=11 // pred_region
          %266 = vsyncadd [#allocation6], 0
          %s267 = sshll.u32 %s3, 4
          %s268 = int_to_ptr.hbm [resolvable:$true] %s267
          %s269 = sshll.u32 [#allocation7], 4
          %s270 = int_to_ptr.vmem [resolvable:$true] %s269
          %275 = dma.hbm_to_vmem [thread:$0]  %s268, 256, %s270, [#allocation6], 64, 64, 4
        $region24: #{tpu_custom_call.1} parent=11 // pred_fallthru
          _
        // Predicated region
        $region25: #{tpu_custom_call.1} parent=11 // pred_check
          %p276 = pneg %p148
        $region26: #{tpu_custom_call.1} parent=11 // pred_check_branch
          %278 = sbr.rel (%p276) target = $region28
        $region27: #{tpu_custom_call.1} parent=11 // pred_region
          _
        $region28: #{tpu_custom_call.1} parent=11 // pred_fallthru
          _
      $region12: #{tpu_custom_call.1} parent=5 // pred_fallthru
        _
      %p279 = scmp.lt.s32.totalorder %s24, 2
      // Predicated region
      $region29: #{tpu_custom_call.1} parent=5 // pred_check
        %p280 = pneg %p279
      $region30: #{tpu_custom_call.1} parent=5 // pred_check_branch
        %282 = sbr.rel (%p280) target = $region32
      $region31: #{tpu_custom_call.1} parent=5 // pred_region
        // Predicated region
        $region33: #{tpu_custom_call.1} parent=31 // pred_check
          %p283 = pneg %p58
        $region34: #{tpu_custom_call.1} parent=31 // pred_check_branch
          %285 = sbr.rel (%p283) target = $region36
        $region35: #{tpu_custom_call.1} parent=31 // pred_region
          %s286 = sand.u32 %s48, 1
          %s287 = scalar_lea.sflag [#allocation3], %s286
          %s288 = sand.u32 %s48, 1
          %s289 = smul.addr %s288, 8
          %s290 = scalar_lea.vmem [#allocation2], %s289
          %292 = vsyncadd %s287, 0
          %s293 = sadd.s32 %s32, %s31
          %s294 = smul.addr %s293, 8
          %s295 = scalar_lea.hbm %s0, %s294
          %s297 = sshll.u32 %s295, 4
          %s298 = int_to_ptr.hbm [resolvable:$true] %s297
          %s299 = sshll.u32 %s290, 4
          %s300 = int_to_ptr.vmem [resolvable:$true] %s299
          %302 = dma.hbm_to_vmem [thread:$0]  %s298, 128, %s300, %s287
        $region36: #{tpu_custom_call.1} parent=31 // pred_fallthru
          _
      $region32: #{tpu_custom_call.1} parent=5 // pred_fallthru
        _
      %p303 = scmp.le.s32.totalorder 1, %s24
      %p304 = scmp.lt.s32.totalorder %s24, 3
      %p305 = pnand %p303, %p304
      %p306 = pneg %p305
      // Predicated region
      $region37: #{tpu_custom_call.1} parent=5 // pred_check
        _
      $region38: #{tpu_custom_call.1} parent=5 // pred_check_branch
        %308 = sbr.rel (%p305) target = $region40
      $region39: #{tpu_custom_call.1} parent=5 // pred_region
        %s309 = ssub.s32 %s24, 1
        %s310 = sand.u32 %s51, 1
        %s311 = scalar_lea.sflag [#allocation3], %s310
        %s312 = sand.u32 %s51, 1
        %s313 = smul.addr %s312, 8
        %s314 = scalar_lea.vmem [#allocation2], %s313
        // Predicated region
        $region41: #{tpu_custom_call.1} parent=39 // pred_check
          %p315 = pneg %p64
        $region42: #{tpu_custom_call.1} parent=39 // pred_check_branch
          %317 = sbr.rel (%p315) target = $region44
        $region43: #{tpu_custom_call.1} parent=39 // pred_region
          %319 = dma.done %s311, 128
        $region44: #{tpu_custom_call.1} parent=39 // pred_fallthru
          _
        // Predicated region
        $region45: #{tpu_custom_call.1} parent=39 // pred_check
          %p320 = pneg %p85
        $region46: #{tpu_custom_call.1} parent=39 // pred_check_branch
          %322 = sbr.rel (%p320) target = $region48
        $region47: #{tpu_custom_call.1} parent=39 // pred_region
          %324 = dma.done [#allocation6], 16
        $region48: #{tpu_custom_call.1} parent=39 // pred_fallthru
          _
        // Predicated region
        $region49: #{tpu_custom_call.1} parent=39 // pred_check
          %p325 = pneg %p127
        $region50: #{tpu_custom_call.1} parent=39 // pred_check_branch
          %327 = sbr.rel (%p325) target = $region52
        $region51: #{tpu_custom_call.1} parent=39 // pred_region
          %329 = dma.done [#allocation6], 256
        $region52: #{tpu_custom_call.1} parent=39 // pred_fallthru
          _
        %s330 = sand.u32 %s51, 1
        %s331 = scalar_lea.sflag [#allocation3], %s330
        %s332 = sand.u32 %s51, 1
        %s333 = smul.addr %s332, 8
        %s334 = scalar_lea.vmem [#allocation2], %s333
        %p335 = pneg %p64
        %p336 = pneg %p61
        %p337 = pneg %p85
        %p338 = pneg %p82
        %p339 = pneg %p106
        %p340 = pneg %p103
        %p341 = pneg %p127
        %p342 = pneg %p124
        %p343 = pneg %p148
        %p344 = pneg %p145
        %p345 = pneg %p176
        %p346 = pneg %p173
        %s347 = sand.u32 %s163, 1
        %s348 = scalar_lea.sflag [#allocation4], %s347
        %s349 = sand.u32 %s163, 1
        %s350 = smul.addr %s349, 4
        %s351 = scalar_lea.vmem [#allocation8], %s350
        %p352 = pneg %p204
        %p353 = pneg %p201
        %s354 = sand.u32 %s29, 1
        %s355 = scalar_lea.sflag [#allocation10], %s354
        %s356 = sand.u32 %s191, 1
        %s357 = smul.addr %s356, 4
        %s358 = scalar_lea.vmem [#allocation9], %s357
        %p359 = pneg %p232
        %p360 = pneg %p229
        %s361 = sand.u32 %s29, 1
        %s362 = scalar_lea.sflag [#allocation10], %s361
        %s363 = sand.u32 %s219, 1
        %s364 = smul.addr %s363, 4
        %s365 = scalar_lea.vmem [#allocation11], %s364
        %v367 = vld [vmem:[%s314] sm:$0xff]
        %v368 = vld [vmem:[#allocation5] sm:$0x1]
        %v369 = vld [vmem:[%s2] sm:$0x1]
        %vm370 = vcmask 261120
        %v371 = vsel %vm370, %v367, 0.0
        %372 = vadd.xlane.f32.xlu0 %v371
        %v373 = vpop.xlane.xlu0 %372
        %v374 = vrcp.pop 32.0
        %v375 = vmul.f32 32.0, %v374
        %v376 = vsub.f32 1.0, %v375
        %v377 = vmul.f32 %v374, %v376
        %v378 = vadd.f32 %v374, %v377
        %vm379 = vweird.f32 %v374
        %v380 = vsel %vm379, %v374, %v378
        %v381 = vmul.f32 %v373, %v380
        %v382 = vsub.f32 %v367, %v381
        %v383 = vmul.f32 %v382, %v382
        %v384 = vsel %vm370, %v383, 0.0
        %385 = vadd.xlane.f32.xlu0 %v384
        %v386 = vpop.xlane.xlu0 %385
        %v387 = vmul.f32 %v386, %v380
        %v388 = vadd.f32 %v387, 1e-05
        %v389 = vrsqrt.pop %v388
        %v390 = vmul.f32 %v389, %v388
        %v391 = vmul.f32 %v390, %v389
        %v392 = vmul.f32 0.5, %v391
        %v393 = vsub.f32 1.5, %v392
        %v394 = vmul.f32 %v389, %v393
        %vm395 = vweird.f32 %v388
        %vm396 = vweird.f32 %v389
        %vm397 = vmor %vm395, %vm396
        %v398 = vsel %vm397, %v389, %v394
        %v399 = vmul.f32 %v382, %v398
        %v401 = vperm.slane %v368, 0
        %v403 = vmul.f32 %v401, %v399
        %v405 = vperm.slane %v369, 0
        %v407 = vadd.f32 %v403, %v405
        %v408 = vpack.c.bf16 %v407, %v407
        %v409 = vld [vmem:[#allocation7] sm:$0xf]
        %v410 = vld [vmem:[#allocation7 + $0x4] sm:$0xf]
        %v411 = vld [vmem:[#allocation7 + $0x8] sm:$0xf]
        %v412 = vld [vmem:[#allocation7 + $0xc] sm:$0xf]
        %v413 = vld [vmem:[%s4] sm:$0x1]
        %v415 = vperm.slane %v413, 0
        %v421 = vunpack.c.l.b16 %v409
        %v422 = vunpack.c.l.b16 %v410
        %v423 = vunpack.c.l.b16 %v411
        %v424 = vunpack.c.l.b16 %v412
        %v425 = vpack.c.b16 %v422, %v421
        %v426 = vpack.c.b16 %v424, %v423
        %v430 = vsel %vm370, %v408, 0
        %432 = vmatpush.bf16.msra.mxu0 0
        %433 = vmatpush.bf16.msra.mxu0 0
        %434 = vmatpush.bf16.msra.mxu0 0
        %435 = vmatpush.bf16.msra.mxu0 0
        %436 = vmatpush.bf16.msra.mxu0 0
        %437 = vmatpush.bf16.msra.mxu0 0
        %438 = vmatpush.bf16.msra.mxu0 %v426
        %439 = vmatpush.bf16.msra.mxu0 %v425
        %440 = vmatmul.bf16.gmra.mxu0 %v430
        %v441 = vpop.f32.mrf.mxu0
        %v442 = vadd.f32 %v415, %v441
        %v443 = vpop.f32.mrf.mxu0
        %444 = vdwg.mxu0
        %v445 = vpack.c.bf16 %v442, %v442
        %vm446 = vcmask 257024
        %447 = vst.msk [vmem:[%s351] sm:$0xf] %vm446, %v445
        %449 = vrot.lane.b32.xlu0 %v445, 96
        %v450 = vpop.permute.xlu0 %449
        %452 = vst.msk [vmem:[%s358] sm:$0xf] %vm446, %v450
        %453 = vrot.lane.b32.xlu0 %v445, 64
        %v454 = vpop.permute.xlu0 %453
        %456 = vst.msk [vmem:[%s365] sm:$0xf] %vm446, %v454
        %s457 = sand.u32 %s163, 1
        %s458 = scalar_lea.sflag [#allocation4], %s457
        %s459 = sand.u32 %s163, 1
        %s460 = smul.addr %s459, 4
        %s461 = scalar_lea.vmem [#allocation8], %s460
        %s462 = sand.u32 %s29, 1
        %s463 = scalar_lea.sflag [#allocation10], %s462
        %s464 = sand.u32 %s191, 1
        %s465 = smul.addr %s464, 4
        %s466 = scalar_lea.vmem [#allocation9], %s465
        %s467 = sand.u32 %s29, 1
        %s468 = scalar_lea.sflag [#allocation10], %s467
        %s469 = sand.u32 %s219, 1
        %s470 = smul.addr %s469, 4
        %s471 = scalar_lea.vmem [#allocation11], %s470
        // Predicated region
        $region53: #{tpu_custom_call.1} parent=39 // pred_check
          %p472 = pneg %p173
        $region54: #{tpu_custom_call.1} parent=39 // pred_check_branch
          %474 = sbr.rel (%p472) target = $region56
        $region55: #{tpu_custom_call.1} parent=39 // pred_region
          %476 = vsyncadd %s458, 0
          %s477 = sadd.s32 %s34, %s33
          %s478 = smul.addr %s477, 4
          %s479 = scalar_lea.hbm %s5, %s478
          %s481 = sshll.u32 %s461, 4
          %s482 = int_to_ptr.vmem [resolvable:$true] %s481
          %s483 = sshll.u32 %s479, 4
          %s484 = int_to_ptr.hbm [resolvable:$true] %s483
          %486 = dma.vmem_to_hbm [thread:$0]  %s482, 64, %s484, %s458
        $region56: #{tpu_custom_call.1} parent=39 // pred_fallthru
          _
        // Predicated region
        $region57: #{tpu_custom_call.1} parent=39 // pred_check
          %p487 = pneg %p201
        $region58: #{tpu_custom_call.1} parent=39 // pred_check_branch
          %489 = sbr.rel (%p487) target = $region60
        $region59: #{tpu_custom_call.1} parent=39 // pred_region
          %491 = vsyncadd %s463, 0
          %s492 = sadd.s32 %s34, %s33
          %s493 = smul.addr %s492, 4
          %s494 = scalar_lea.hbm %s6, %s493
          %s496 = sshll.u32 %s466, 4
          %s497 = int_to_ptr.vmem [resolvable:$true] %s496
          %s498 = sshll.u32 %s494, 4
          %s499 = int_to_ptr.hbm [resolvable:$true] %s498
          %501 = dma.vmem_to_hbm [thread:$0]  %s497, 64, %s499, %s463
        $region60: #{tpu_custom_call.1} parent=39 // pred_fallthru
          _
        // Predicated region
        $region61: #{tpu_custom_call.1} parent=39 // pred_check
          %p502 = pneg %p229
        $region62: #{tpu_custom_call.1} parent=39 // pred_check_branch
          %504 = sbr.rel (%p502) target = $region64
        $region63: #{tpu_custom_call.1} parent=39 // pred_region
          %506 = vsyncadd %s468, 0
          %s507 = sadd.s32 %s34, %s33
          %s508 = smul.addr %s507, 4
          %s509 = scalar_lea.hbm %s7, %s508
          %s511 = sshll.u32 %s471, 4
          %s512 = int_to_ptr.vmem [resolvable:$true] %s511
          %s513 = sshll.u32 %s509, 4
          %s514 = int_to_ptr.hbm [resolvable:$true] %s513
          %516 = dma.vmem_to_hbm [thread:$0]  %s512, 64, %s514, %s468
        $region64: #{tpu_custom_call.1} parent=39 // pred_fallthru
          _
      $region40: #{tpu_custom_call.1} parent=5 // pred_fallthru
        _
      %p517 = scmp.le.s32.totalorder 2, %s24
      // Predicated region
      $region65: #{tpu_custom_call.1} parent=5 // pred_check
        %p518 = pneg %p517
      $region66: #{tpu_custom_call.1} parent=5 // pred_check_branch
        %520 = sbr.rel (%p518) target = $region68
      $region67: #{tpu_custom_call.1} parent=5 // pred_region
        %s521 = ssub.s32 %s24, 2
        // Predicated region
        $region69: #{tpu_custom_call.1} parent=67 // pred_check
          %p522 = pneg %p179
        $region70: #{tpu_custom_call.1} parent=67 // pred_check_branch
          %524 = sbr.rel (%p522) target = $region72
        $region71: #{tpu_custom_call.1} parent=67 // pred_region
          %s525 = sand.u32 %s164, 1
          %s526 = scalar_lea.sflag [#allocation4], %s525
          %s527 = sand.u32 %s164, 1
          %s528 = smul.addr %s527, 4
          %s529 = scalar_lea.vmem [#allocation8], %s528
          %531 = dma.done %s526, 64
        $region72: #{tpu_custom_call.1} parent=67 // pred_fallthru
          _
        // Predicated region
        $region73: #{tpu_custom_call.1} parent=67 // pred_check
          %p532 = pneg %p207
        $region74: #{tpu_custom_call.1} parent=67 // pred_check_branch
          %534 = sbr.rel (%p532) target = $region76
        $region75: #{tpu_custom_call.1} parent=67 // pred_region
          %s535 = sand.u32 %s30, 1
          %s536 = scalar_lea.sflag [#allocation10], %s535
          %s537 = sand.u32 %s192, 1
          %s538 = smul.addr %s537, 4
          %s539 = scalar_lea.vmem [#allocation9], %s538
          %541 = dma.done %s536, 64
        $region76: #{tpu_custom_call.1} parent=67 // pred_fallthru
          _
        // Predicated region
        $region77: #{tpu_custom_call.1} parent=67 // pred_check
          %p542 = pneg %p235
        $region78: #{tpu_custom_call.1} parent=67 // pred_check_branch
          %544 = sbr.rel (%p542) target = $region80
        $region79: #{tpu_custom_call.1} parent=67 // pred_region
          %s545 = sand.u32 %s30, 1
          %s546 = scalar_lea.sflag [#allocation10], %s545
          %s547 = sand.u32 %s220, 1
          %s548 = smul.addr %s547, 4
          %s549 = scalar_lea.vmem [#allocation11], %s548
          %551 = dma.done %s546, 64
        $region80: #{tpu_custom_call.1} parent=67 // pred_fallthru
          _
      $region68: #{tpu_custom_call.1} parent=5 // pred_fallthru
        _
    $region6: #{tpu_custom_call.1} parent=1 // loop_footer
      %s28 = sadd.s32 1, %s24
    $region7: #{tpu_custom_call.1} parent=1 // loop_footer_branch
      %23 = sbr.rel target = $region3
    $region8: #{tpu_custom_call.1} parent=1 // loop_exit
      _
    %552 = vsyncpa [#allocation3], 1
    %s553 = scalar_lea.sflag [#allocation3], 1
    %554 = vsyncpa %s553, 1
    %555 = vsyncpa [#allocation6], 1
    %556 = vsyncpa [#allocation4], 1
    %s557 = scalar_lea.sflag [#allocation4], 1
    %558 = vsyncpa %s557, 1
    %559 = vsyncpa [#allocation10], 1
    %s560 = scalar_lea.sflag [#allocation10], 1
    %561 = vsyncpa %s560, 1

</llo_original>
